<compile_context>
chip_gen: v7x
topology: tpu7x:2x2x1
jax: 0.10.0
libtpu: 0.0.40
codegen_flags: <defaults>
</compile_context>

<pallas_src>
import functools

import jax
import jax.numpy as jnp
from jax.experimental import pallas as pl
from jax.experimental.pallas import tpu as pltpu


# ------------------------------ Pallas kernel ------------------------------

def _ln_kernel(x_ref, g_ref, b_ref, o_ref, *, eps, inv_c):
    # x_ref: (1, C, tl) in the input's native dtype (C on sublanes, spatial
    # tile lane-dense).  g_ref / b_ref: (1, C, 1) f32, broadcast along lanes
    # in-register (no (C, tl) temporary is written back to VMEM).
    x = x_ref[...].astype(jnp.float32)                       # upcast in-register
    s1 = jnp.sum(x, axis=1, keepdims=True)                   # (1, 1, tl)
    s2 = jnp.sum(x * x, axis=1, keepdims=True)               # (1, 1, tl)
    mu = s1 * inv_c
    var = jnp.maximum(s2 * inv_c - mu * mu, 0.0)             # biased var, one-pass
    scale = jax.lax.rsqrt(var + eps) * g_ref[...]            # (1, C, tl)
    o_ref[...] = ((x - mu) * scale + b_ref[...]).astype(o_ref.dtype)


# ------------------------------ tiling helpers ------------------------------

def _vmem_capacity_bytes():
    """Best-effort physical-VMEM query; conservative fallbacks."""
    try:
        return int(pltpu.get_tpu_info().vmem_capacity_bytes)
    except Exception:
        pass
    try:
        if "v7" in jax.devices()[0].device_kind.lower():
            return 64 << 20
    except Exception:
        pass
    return 128 << 20


def _pick_tl(L, C, io_itemsize, max_io_block_bytes):
    """Largest lane-tile (multiple of 128, or full L) whose streamed I/O block
    fits the budget.  f32 in-kernel temporaries (~3 blocks after the one-pass
    rewrite) are accounted for in the budget choice itself."""
    bytes_per_lane = C * io_itemsize
    if L <= 128 or bytes_per_lane * L <= max_io_block_bytes:
        return L
    cap = max(128, ((max_io_block_bytes // bytes_per_lane) // 128) * 128)
    # Prefer an exact divisor of L, but never one much smaller than cap:
    # tiny tiles shrink contiguous DMA runs and per-step work.
    lo = max(128, (cap // 2 // 128) * 128)
    for t in range(cap, lo - 1, -128):
        if L % t == 0:
            return t
    return cap        # ragged last tile; out-of-range lanes are masked on store


def _dimension_semantics(num_l_tiles):
    """Shard across both TensorCores on v7x; plain parallel elsewhere."""
    try:
        is_v7 = "v7" in jax.devices()[0].device_kind.lower()
    except Exception:
        is_v7 = False
    if is_v7 and num_l_tiles >= 2 and num_l_tiles % 2 == 0:
        return (pltpu.PARALLEL, pltpu.CORE_PARALLEL)
    return (pltpu.PARALLEL, pltpu.PARALLEL)


# -------------------------------- wrapper ----------------------------------

def layernorm_channels(x, weight, bias, eps=1e-6):
    """Channel-wise LayerNorm for channel-first inputs (B, C, *spatial).

    Matches models/vitdet.py::LayerNorm.forward (spatial_dims = 2 or 3).
    I/O stays in x.dtype; all arithmetic is f32 in-register.
    """
    B, C = int(x.shape[0]), int(x.shape[1])
    L = 1
    for s in x.shape[2:]:
        L *= int(s)

    x3 = x.reshape(B, C, L)                               # free reshape, no permute
    g = weight.reshape(1, C, 1).astype(jnp.float32)
    b = bias.reshape(1, C, 1).astype(jnp.float32)

    io_itemsize = jnp.dtype(x.dtype).itemsize
    # 2 MiB I/O blocks on 64-MiB-VMEM chips (v7x), 4 MiB elsewhere.  With
    # double-buffered in/out blocks plus ~3 f32 working copies this stays well
    # under the 32 MiB scoped limit on every generation.
    max_io_block = (2 << 20) if _vmem_capacity_bytes() <= (64 << 20) else (4 << 20)
    tl = _pick_tl(L, C, io_itemsize, max_io_block)
    num_l_tiles = pl.cdiv(L, tl)
    grid = (B, num_l_tiles)

    out = pl.pallas_call(
        functools.partial(_ln_kernel, eps=float(eps), inv_c=1.0 / C),
        out_shape=jax.ShapeDtypeStruct((B, C, L), x.dtype),
        grid=grid,
        in_specs=[
            pl.BlockSpec((1, C, tl), lambda bi, li: (bi, 0, li)),
            pl.BlockSpec((1, C, 1), lambda bi, li: (0, 0, 0)),   # revisited, no re-DMA
            pl.BlockSpec((1, C, 1), lambda bi, li: (0, 0, 0)),
        ],
        out_specs=pl.BlockSpec((1, C, tl), lambda bi, li: (bi, 0, li)),
        compiler_params=pltpu.CompilerParams(
            dimension_semantics=_dimension_semantics(num_l_tiles),
            vmem_limit_bytes=32 * 1024 * 1024,
        ),
    )(x3, g, b)
    return out.reshape(x.shape)


# ---------------------------------- main -----------------------------------

if __name__ == "__main__":
    B, C, H, W = 2, 32, 16, 16
    eps = 1e-6

    key = jax.random.PRNGKey(0)
    kx, kg, kb = jax.random.split(key, 3)
    x = jax.random.normal(kx, (B, C, H, W), jnp.float32)
    weight = 1.0 + 0.1 * jax.random.normal(kg, (C,), jnp.float32)
    bias = 0.1 * jax.random.normal(kb, (C,), jnp.float32)

    fwd = jax.jit(functools.partial(layernorm_channels, eps=eps))
    y = jax.block_until_ready(fwd(x, weight, bias))

    # Reference: same math as F.layer_norm over the channel dim (NCHW in/out).
    mu = jnp.mean(x, axis=1, keepdims=True)
    var = jnp.mean((x - mu) ** 2, axis=1, keepdims=True)
    ref = (x - mu) / jnp.sqrt(var + eps)
    ref = ref * weight[None, :, None, None] + bias[None, :, None, None]

    assert y.shape == x.shape and y.dtype == x.dtype, (y.shape, y.dtype)
    max_err = float(jnp.max(jnp.abs(y - ref)))
    assert max_err < 1e-5, max_err

    # bf16 streaming path: I/O in bf16, f32 compute in-register.
    xb = x.astype(jnp.bfloat16)
    yb = jax.block_until_ready(fwd(xb, weight, bias))
    assert yb.dtype == jnp.bfloat16 and yb.shape == x.shape
    max_err_bf16 = float(jnp.max(jnp.abs(yb.astype(jnp.float32) - ref)))
    assert max_err_bf16 < 6e-2, max_err_bf16

    print("KERNEL_OK")
</pallas_src>

<mosaic_0001>
module attributes {stable_mosaic.version = 11 : i64} {
  func.func @_ln_kernel(%arg0: i32, %arg1: i32, %arg2: memref<1x32x256xf32, #tpu.memory_space<vmem>>, %arg3: memref<1x32x1xf32, #tpu.memory_space<vmem>>, %arg4: memref<1x32x1xf32, #tpu.memory_space<vmem>>, %arg5: memref<1x32x256xf32, #tpu.memory_space<vmem>>) attributes {dimension_semantics = [#tpu.dimension_semantics<parallel>, #tpu.dimension_semantics<parallel>], iteration_bounds = array<i64: 2, 1>, scalar_prefetch = 0 : i64, scratch_operands = 0 : i64, tpu.core_type = #tpu.core_type<tc>, window_params = [{transform_indices = @transform_0, window_bounds = array<i64: 1, 32, 256>}, {pipeline_mode = #tpu.pipeline_mode<synchronous>, transform_indices = @transform_1, window_bounds = array<i64: 1, 32, 1>}, {pipeline_mode = #tpu.pipeline_mode<synchronous>, transform_indices = @transform_2, window_bounds = array<i64: 1, 32, 1>}, {transform_indices = @transform_3, window_bounds = array<i64: 1, 32, 256>}]} {
    %c0 = arith.constant 0 : index
    %c0_0 = arith.constant 0 : index
    %c0_1 = arith.constant 0 : index
    %0 = vector.load %arg2[%c0, %c0_0, %c0_1] : memref<1x32x256xf32, #tpu.memory_space<vmem>>, vector<1x32x256xf32>
    %cst = arith.constant dense<0.000000e+00> : vector<1x256xf32>
    %1 = vector.multi_reduction <add>, %0, %cst [1] : vector<1x32x256xf32> to vector<1x256xf32>
    %2 = vector.shape_cast %1 : vector<1x256xf32> to vector<1x1x256xf32>
    %3 = arith.mulf %0, %0 : vector<1x32x256xf32>
    %cst_2 = arith.constant dense<0.000000e+00> : vector<1x256xf32>
    %4 = vector.multi_reduction <add>, %3, %cst_2 [1] : vector<1x32x256xf32> to vector<1x256xf32>
    %5 = vector.shape_cast %4 : vector<1x256xf32> to vector<1x1x256xf32>
    %cst_3 = arith.constant 3.125000e-02 : f32
    %6 = vector.broadcast %cst_3 : f32 to vector<1x1x256xf32>
    %7 = arith.mulf %2, %6 : vector<1x1x256xf32>
    %cst_4 = arith.constant 3.125000e-02 : f32
    %8 = vector.broadcast %cst_4 : f32 to vector<1x1x256xf32>
    %9 = arith.mulf %5, %8 : vector<1x1x256xf32>
    %10 = arith.mulf %7, %7 : vector<1x1x256xf32>
    %11 = arith.subf %9, %10 : vector<1x1x256xf32>
    %cst_5 = arith.constant 0.000000e+00 : f32
    %12 = vector.broadcast %cst_5 : f32 to vector<1x1x256xf32>
    %13 = arith.maximumf %11, %12 : vector<1x1x256xf32>
    %cst_6 = arith.constant 9.99999997E-7 : f32
    %14 = vector.broadcast %cst_6 : f32 to vector<1x1x256xf32>
    %15 = arith.addf %13, %14 : vector<1x1x256xf32>
    %16 = math.rsqrt %15 : vector<1x1x256xf32>
    %c0_7 = arith.constant 0 : index
    %c0_8 = arith.constant 0 : index
    %c0_9 = arith.constant 0 : index
    %17 = vector.load %arg3[%c0_7, %c0_8, %c0_9] : memref<1x32x1xf32, #tpu.memory_space<vmem>>, vector<1x32x1xf32>
    %18 = vector.broadcast %16 : vector<1x1x256xf32> to vector<1x32x256xf32>
    %19 = vector.broadcast %17 : vector<1x32x1xf32> to vector<1x32x256xf32>
    %20 = arith.mulf %18, %19 : vector<1x32x256xf32>
    %21 = vector.broadcast %7 : vector<1x1x256xf32> to vector<1x32x256xf32>
    %22 = arith.subf %0, %21 : vector<1x32x256xf32>
    %23 = arith.mulf %22, %20 : vector<1x32x256xf32>
    %c0_10 = arith.constant 0 : index
    %c0_11 = arith.constant 0 : index
    %c0_12 = arith.constant 0 : index
    %24 = vector.load %arg4[%c0_10, %c0_11, %c0_12] : memref<1x32x1xf32, #tpu.memory_space<vmem>>, vector<1x32x1xf32>
    %25 = vector.broadcast %24 : vector<1x32x1xf32> to vector<1x32x256xf32>
    %26 = arith.addf %23, %25 : vector<1x32x256xf32>
    %c0_13 = arith.constant 0 : index
    %c0_14 = arith.constant 0 : index
    %c0_15 = arith.constant 0 : index
    %27 = vector.load %arg5[%c0_13, %c0_14, %c0_15] : memref<1x32x256xf32, #tpu.memory_space<vmem>>, vector<1x32x256xf32>
    tpu.vector_store %arg5[%c0_13, %c0_14, %c0_15], %26 {strides = array<i32>} : memref<1x32x256xf32, #tpu.memory_space<vmem>>, vector<1x32x256xf32>,
    return
  }
  func.func @transform_0(%arg0: i32, %arg1: i32) -> (i32, i32, i32) {
    %c0_i32 = arith.constant 0 : i32
    %c0_i32_0 = arith.constant 0 : i32
    return %arg0, %c0_i32, %arg1 : i32, i32, i32
  }
  func.func @transform_1(%arg0: i32, %arg1: i32) -> (i32, i32, i32) {
    %c0_i32 = arith.constant 0 : i32
    %c0_i32_0 = arith.constant 0 : i32
    %c0_i32_1 = arith.constant 0 : i32
    %c0_i32_2 = arith.constant 0 : i32
    return %c0_i32, %c0_i32_0, %c0_i32_1 : i32, i32, i32
  }
  func.func @transform_2(%arg0: i32, %arg1: i32) -> (i32, i32, i32) {
    %c0_i32 = arith.constant 0 : i32
    %c0_i32_0 = arith.constant 0 : i32
    %c0_i32_1 = arith.constant 0 : i32
    %c0_i32_2 = arith.constant 0 : i32
    return %c0_i32, %c0_i32_0, %c0_i32_1 : i32, i32, i32
  }
  func.func @transform_3(%arg0: i32, %arg1: i32) -> (i32, i32, i32) {
    %c0_i32 = arith.constant 0 : i32
    %c0_i32_0 = arith.constant 0 : i32
    return %arg0, %c0_i32, %arg1 : i32, i32, i32
  }
}

</mosaic_0001>

<llo_original>
// kernel: layernorm_channels.1
$region0: #{layernorm_channels.1}
  #allocation0 [shape = 'u32[]', space=smem, size = 0x4, offset = 0x4, fixed_abs, tag = 'smem constant byte address 0x4 - core index']
  #allocation1 [shape = 'u32[144,128]{1,0:T(1,128)}', space=vmem, size = 0x12000, scoped, tag = 'internal scratch']
  %s0 = inlined_call_operand.vmem [shape: f32[2,32,256], index: 0, kind: input, shape index: {}]
  %s1 = inlined_call_operand.vmem [shape: f32[1,32,1], index: 1, kind: input, shape index: {}]
  %s2 = inlined_call_operand.vmem [shape: f32[1,32,1], index: 2, kind: input, shape index: {}]
  %s3 = inlined_call_operand.vmem [shape: f32[2,32,256], index: 3, kind: output, shape index: {}]
  %s4 = sld [smem:[#allocation0]]
  $region45: #{layernorm_channels.1} parent=0
    _
  %s6 = ssub.s32 1, %s4
  %s7 = scalar_select 0, %s6, %s4
  loop: start=0, step=1, limit=4
  $region2: #{layernorm_channels.1} parent=0 // loop_pre_header
    _
  $region3: #{layernorm_channels.1} parent=0 // loop_header
    %s9 = sphi 0, %s13
    %p10 = scmp.ge.s32.totalorder %s9, 4
    %s16 = sphi 0, %s28
    %s17 = sphi 0, %s24
    %s18 = sphi 0, %s16
    %s19 = sphi 0, %s17
    %s20 = sphi 0, %s18
    %s21 = sphi 0, %s19
    %s33 = sphi 0, %s35
    %s36 = sphi 0, %s33
    %s37 = sphi 0, %s36
    %s53 = sphi 0, %s37
    %s57 = sphi 0, %s57
    %s59 = sphi 0, %s57
    %s60 = sphi 0, %s59
    %s74 = sphi 0, %s60
    %s78 = sphi 0, %s78
    %s80 = sphi 0, %s78
    %s81 = sphi 0, %s80
    %s95 = sphi 0, %s81
    %s103 = sphi 0, %s105
    %s106 = sphi 0, %s103
    %s107 = sphi 0, %s106
    %s123 = sphi 0, %s107
  $region4: #{layernorm_channels.1} parent=0 // loop_header_branch
    %12 = sbr.rel (%p10) target = $region8
  $region5: #{layernorm_channels.1} parent=0 // loop_body
    %s14 = ssub.s32 %s9, 1
    %s15 = ssub.s32 %s9, 2
    %s22 = sadd.s32 1, %s17
    %p23 = scmp.ge.s32.totalorder %s22, 1
    %s24 = scalar_select %p23, 0, %s22
    %s25 = sadd.s32 1, %s16
    %s26 = scalar_select %p23, %s25, %s16
    %p27 = scmp.ge.s32.totalorder %s26, 2
    %s28 = scalar_select %p27, 0, %s26
    %s29 = ssub.s32 %s16, %s28
    %s30 = ssub.s32 %s17, %s24
    %s31 = sor.u32 %s29, %s30
    %p32 = scmp.eq.s32.totalorder %s31, 0
    %s34 = sadd.s32 %s33, 1
    %s35 = scalar_select %p32, %s33, %s34
    %p38 = pneg %p32
    %p39 = scmp.eq.s32.totalorder %s9, 1
    %p40 = por %p38, %p39
    %p41 = scmp.ne.s32.totalorder %s33, %s36
    %p42 = scmp.eq.s32.totalorder %s9, 0
    %p43 = por %p41, %p42
    %p44 = scmp.ne.s32.totalorder %s33, %s36
    %p45 = scmp.eq.s32.totalorder %s14, 1
    %p46 = por %p44, %p45
    %p47 = scmp.ne.s32.totalorder %s36, %s37
    %p48 = scmp.eq.s32.totalorder %s14, 0
    %p49 = por %p47, %p48
    %p50 = scmp.ne.s32.totalorder %s36, %s37
    %p51 = scmp.eq.s32.totalorder %s15, 1
    %p52 = por %p50, %p51
    %p54 = scmp.ne.s32.totalorder %s37, %s53
    %p55 = scmp.eq.s32.totalorder %s15, 0
    %p56 = por %p54, %p55
    %s58 = sadd.s32 %s57, 1
    %p61 = scmp.eq.s32.totalorder %s9, 1
    %p62 = scmp.ne.s32.totalorder %s57, %s59
    %p63 = scmp.eq.s32.totalorder %s9, 0
    %p64 = por %p62, %p63
    %p65 = scmp.ne.s32.totalorder %s57, %s59
    %p66 = scmp.eq.s32.totalorder %s14, 1
    %p67 = por %p65, %p66
    %p68 = scmp.ne.s32.totalorder %s59, %s60
    %p69 = scmp.eq.s32.totalorder %s14, 0
    %p70 = por %p68, %p69
    %p71 = scmp.ne.s32.totalorder %s59, %s60
    %p72 = scmp.eq.s32.totalorder %s15, 1
    %p73 = por %p71, %p72
    %p75 = scmp.ne.s32.totalorder %s60, %s74
    %p76 = scmp.eq.s32.totalorder %s15, 0
    %p77 = por %p75, %p76
    %s79 = sadd.s32 %s78, 1
    %p82 = scmp.eq.s32.totalorder %s9, 1
    %p83 = scmp.ne.s32.totalorder %s78, %s80
    %p84 = scmp.eq.s32.totalorder %s9, 0
    %p85 = por %p83, %p84
    %p86 = scmp.ne.s32.totalorder %s78, %s80
    %p87 = scmp.eq.s32.totalorder %s14, 1
    %p88 = por %p86, %p87
    %p89 = scmp.ne.s32.totalorder %s80, %s81
    %p90 = scmp.eq.s32.totalorder %s14, 0
    %p91 = por %p89, %p90
    %p92 = scmp.ne.s32.totalorder %s80, %s81
    %p93 = scmp.eq.s32.totalorder %s15, 1
    %p94 = por %p92, %p93
    %p96 = scmp.ne.s32.totalorder %s81, %s95
    %p97 = scmp.eq.s32.totalorder %s15, 0
    %p98 = por %p96, %p97
    %s99 = ssub.s32 %s16, %s28
    %s100 = ssub.s32 %s17, %s24
    %s101 = sor.u32 %s99, %s100
    %p102 = scmp.eq.s32.totalorder %s101, 0
    %s104 = sadd.s32 %s103, 1
    %s105 = scalar_select %p102, %s103, %s104
    %p108 = pneg %p102
    %p109 = scmp.eq.s32.totalorder %s9, 1
    %p110 = por %p108, %p109
    %p111 = scmp.ne.s32.totalorder %s103, %s106
    %p112 = scmp.eq.s32.totalorder %s9, 0
    %p113 = por %p111, %p112
    %p114 = scmp.ne.s32.totalorder %s103, %s106
    %p115 = scmp.eq.s32.totalorder %s14, 1
    %p116 = por %p114, %p115
    %p117 = scmp.ne.s32.totalorder %s106, %s107
    %p118 = scmp.eq.s32.totalorder %s14, 0
    %p119 = por %p117, %p118
    %p120 = scmp.ne.s32.totalorder %s106, %s107
    %p121 = scmp.eq.s32.totalorder %s15, 1
    %p122 = por %p120, %p121
    %p124 = scmp.ne.s32.totalorder %s107, %s123
    %p125 = scmp.eq.s32.totalorder %s15, 0
    %p126 = por %p124, %p125
    %p127 = scmp.le.s32.totalorder 1, %s9
    %p128 = scmp.lt.s32.totalorder %s9, 3
    %p129 = pnand %p127, %p128
    %p130 = pneg %p129
    // Predicated region
    $region9: #{layernorm_channels.1} parent=5 // pred_check
      _
    $region10: #{layernorm_channels.1} parent=5 // pred_check_branch
      %132 = sbr.rel (%p129) target = $region12
    $region11: #{layernorm_channels.1} parent=5 // pred_region
      %s133 = ssub.s32 %s9, 1
      // Predicated region
      $region13: #{layernorm_channels.1} parent=11 // pred_check
        %p134 = pneg %p70
      $region14: #{layernorm_channels.1} parent=11 // pred_check_branch
        %136 = sbr.rel (%p134) target = $region16
      $region15: #{layernorm_channels.1} parent=11 // pred_region
        _
      $region16: #{layernorm_channels.1} parent=11 // pred_fallthru
        _
      // Predicated region
      $region17: #{layernorm_channels.1} parent=11 // pred_check
        %p137 = pneg %p91
      $region18: #{layernorm_channels.1} parent=11 // pred_check_branch
        %139 = sbr.rel (%p137) target = $region20
      $region19: #{layernorm_channels.1} parent=11 // pred_region
        _
      $region20: #{layernorm_channels.1} parent=11 // pred_fallthru
        _
    $region12: #{layernorm_channels.1} parent=5 // pred_fallthru
      _
    %p140 = scmp.lt.s32.totalorder %s9, 2
    // Predicated region
    $region21: #{layernorm_channels.1} parent=5 // pred_check
      %p141 = pneg %p140
    $region22: #{layernorm_channels.1} parent=5 // pred_check_branch
      %143 = sbr.rel (%p141) target = $region24
    $region23: #{layernorm_channels.1} parent=5 // pred_region
      // Predicated region
      $region25: #{layernorm_channels.1} parent=23 // pred_check
        %p144 = pneg %p43
      $region26: #{layernorm_channels.1} parent=23 // pred_check_branch
        %146 = sbr.rel (%p144) target = $region28
      $region27: #{layernorm_channels.1} parent=23 // pred_region
        %s147 = smul.u32 2, %s17
        %p148 = scmp.lt.s32.totalorder %s16, 1
        %s149 = scalar_select %p148, %s16, 1
        %p150 = scmp.lt.s32.totalorder %s147, 1
        %s151 = scalar_select %p150, %s147, 1
        %s152 = smul.addr %s149, 8
        %s153 = sadd.s32 %s151, %s152
        %s154 = smul.addr %s153, 8
        %s155 = scalar_lea.vmem %s0, %s154
        %s156 = smul.u32 2, %s17
      $region28: #{layernorm_channels.1} parent=23 // pred_fallthru
        _
    $region24: #{layernorm_channels.1} parent=5 // pred_fallthru
      _
    %p157 = scmp.le.s32.totalorder 1, %s9
    %p158 = scmp.lt.s32.totalorder %s9, 3
    %p159 = pnand %p157, %p158
    %p160 = pneg %p159
    // Predicated region
    $region29: #{layernorm_channels.1} parent=5 // pred_check
      _
    $region30: #{layernorm_channels.1} parent=5 // pred_check_branch
      %162 = sbr.rel (%p159) target = $region32
    $region31: #{layernorm_channels.1} parent=5 // pred_region
      %s163 = ssub.s32 %s9, 1
      %s164 = smul.u32 2, %s19
      %p165 = scmp.lt.s32.totalorder %s18, 1
      %s166 = scalar_select %p165, %s18, 1
      %p167 = scmp.lt.s32.totalorder %s164, 1
      %s168 = scalar_select %p167, %s164, 1
      %s169 = smul.addr %s166, 8
      %s170 = sadd.s32 %s168, %s169
      %s171 = smul.addr %s170, 8
      %s172 = scalar_lea.vmem %s0, %s171
      %p173 = pneg %p49
      %p174 = pneg %p46
      %p175 = pneg %p70
      %p176 = pneg %p67
      %p177 = pneg %p91
      %p178 = pneg %p88
      %p179 = pneg %p119
      %p180 = pneg %p116
      %s181 = smul.u32 2, %s19
      %p182 = scmp.lt.s32.totalorder %s18, 1
      %s183 = scalar_select %p182, %s18, 1
      %p184 = scmp.lt.s32.totalorder %s181, 1
      %s185 = scalar_select %p184, %s181, 1
      %s186 = smul.addr %s183, 8
      %s187 = sadd.s32 %s185, %s186
      %s188 = smul.addr %s187, 8
      %s189 = scalar_lea.vmem %s3, %s188
      %s190 = smul.u32 2, %s19
      %p191 = scmp.lt.s32.totalorder %s18, 1
      %s192 = scalar_select %p191, %s18, 1
      %p193 = scmp.lt.s32.totalorder %s190, 1
      %s194 = scalar_select %p193, %s190, 1
      %s195 = smul.addr %s192, 8
      %s196 = sadd.s32 %s194, %s195
      %s197 = smul.addr %s196, 8
      %s198 = scalar_lea.vmem %s0, %s197
      %s199 = smul.u32 2, %s19
      %s200 = smul.u32 2, %s19
      %p201 = scmp.lt.s32.totalorder %s18, 1
      %s202 = scalar_select %p201, %s18, 1
      %p203 = scmp.lt.s32.totalorder %s200, 1
      %s204 = scalar_select %p203, %s200, 1
      %s205 = smul.addr %s202, 8
      %s206 = sadd.s32 %s204, %s205
      %s207 = smul.addr %s206, 8
      %s208 = scalar_lea.vmem %s3, %s207
      %s209 = smul.u32 2, %s19
      %v210 = vld [vmem:[%s198] sm:$0xff]
      %v211 = vld [vmem:[%s198 + $0x8] sm:$0xff]
      %v212 = vld [vmem:[%s198 + $0x10] sm:$0xff]
      %v213 = vld [vmem:[%s198 + $0x18] sm:$0xff]
      %v214 = vld [vmem:[%s198 + $0x20] sm:$0xff]
      %v215 = vld [vmem:[%s198 + $0x28] sm:$0xff]
      %v216 = vld [vmem:[%s198 + $0x30] sm:$0xff]
      %v217 = vld [vmem:[%s198 + $0x38] sm:$0xff]
      %v218 = vadd.f32 %v210, %v212
      %v219 = vadd.f32 %v218, %v214
      %v220 = vadd.f32 %v219, %v216
      %v221 = vrot.slane %v220, 4
      %v222 = vadd.f32 %v220, %v221
      %v223 = vrot.slane %v222, 2
      %v224 = vadd.f32 %v222, %v223
      %v225 = vrot.slane %v224, 1
      %v226 = vadd.f32 %v224, %v225
      %v227 = vadd.f32 %v211, %v213
      %v228 = vadd.f32 %v227, %v215
      %v229 = vadd.f32 %v228, %v217
      %v230 = vrot.slane %v229, 4
      %v231 = vadd.f32 %v229, %v230
      %v232 = vrot.slane %v231, 2
      %v233 = vadd.f32 %v231, %v232
      %v234 = vrot.slane %v233, 1
      %v235 = vadd.f32 %v233, %v234
      %v236 = vmul.f32 %v210, %v210
      %v237 = vmul.f32 %v211, %v211
      %v238 = vmul.f32 %v212, %v212
      %v239 = vmul.f32 %v213, %v213
      %v240 = vmul.f32 %v214, %v214
      %v241 = vmul.f32 %v215, %v215
      %v242 = vmul.f32 %v216, %v216
      %v243 = vmul.f32 %v217, %v217
      %v244 = vadd.f32 %v236, %v238
      %v245 = vadd.f32 %v244, %v240
      %v246 = vadd.f32 %v245, %v242
      %v247 = vrot.slane %v246, 4
      %v248 = vadd.f32 %v246, %v247
      %v249 = vrot.slane %v248, 2
      %v250 = vadd.f32 %v248, %v249
      %v251 = vrot.slane %v250, 1
      %v252 = vadd.f32 %v250, %v251
      %v253 = vadd.f32 %v237, %v239
      %v254 = vadd.f32 %v253, %v241
      %v255 = vadd.f32 %v254, %v243
      %v256 = vrot.slane %v255, 4
      %v257 = vadd.f32 %v255, %v256
      %v258 = vrot.slane %v257, 2
      %v259 = vadd.f32 %v257, %v258
      %v260 = vrot.slane %v259, 1
      %v261 = vadd.f32 %v259, %v260
      %v262 = vmul.f32 %v226, 0.03125
      %v263 = vmul.f32 %v235, 0.03125
      %v264 = vmul.f32 %v252, 0.03125
      %v265 = vmul.f32 %v261, 0.03125
      %v266 = vmul.f32 %v262, %v262
      %v267 = vmul.f32 %v263, %v263
      %v268 = vsub.f32 %v264, %v266
      %v269 = vsub.f32 %v265, %v267
      %v270 = vmax.f32 %v268, 0.0
      %v271 = vmax.f32 %v269, 0.0
      %v272 = vadd.f32 %v270, 1e-06
      %v273 = vadd.f32 %v271, 1e-06
      %v274 = vrsqrt.pop %v272
      %v275 = vrsqrt.pop %v273
      %v276 = vld [vmem:[%s1] sm:$0xff]
      %v277 = vld [vmem:[%s1 + $0x8] sm:$0xff]
      %v278 = vld [vmem:[%s1 + $0x10] sm:$0xff]
      %v279 = vld [vmem:[%s1 + $0x18] sm:$0xff]
      %281 = vset.pattern.permute.xlu0 0
      %282 = vperm.xlu0 %281, %v276
      %v283 = vpop.permute.xlu0 %282
      %286 = vset.pattern.permute.xlu0 0
      %287 = vperm.xlu0 %286, %v277
      %v288 = vpop.permute.xlu0 %287
      %291 = vset.pattern.permute.xlu0 0
      %292 = vperm.xlu0 %291, %v278
      %v293 = vpop.permute.xlu0 %292
      %296 = vset.pattern.permute.xlu0 0
      %297 = vperm.xlu0 %296, %v279
      %v298 = vpop.permute.xlu0 %297
      %v300 = vmul.f32 %v274, %v283
      %v301 = vmul.f32 %v275, %v283
      %v302 = vmul.f32 %v274, %v288
      %v303 = vmul.f32 %v275, %v288
      %v304 = vmul.f32 %v274, %v293
      %v305 = vmul.f32 %v275, %v293
      %v306 = vmul.f32 %v274, %v298
      %v307 = vmul.f32 %v275, %v298
      %v308 = vsub.f32 %v210, %v262
      %v309 = vsub.f32 %v211, %v263
      %v310 = vsub.f32 %v212, %v262
      %v311 = vsub.f32 %v213, %v263
      %v312 = vsub.f32 %v214, %v262
      %v313 = vsub.f32 %v215, %v263
      %v314 = vsub.f32 %v216, %v262
      %v315 = vsub.f32 %v217, %v263
      %v316 = vmul.f32 %v308, %v300
      %v317 = vmul.f32 %v309, %v301
      %v318 = vmul.f32 %v310, %v302
      %v319 = vmul.f32 %v311, %v303
      %v320 = vmul.f32 %v312, %v304
      %v321 = vmul.f32 %v313, %v305
      %v322 = vmul.f32 %v314, %v306
      %v323 = vmul.f32 %v315, %v307
      %v324 = vld [vmem:[%s2] sm:$0xff]
      %v325 = vld [vmem:[%s2 + $0x8] sm:$0xff]
      %v326 = vld [vmem:[%s2 + $0x10] sm:$0xff]
      %v327 = vld [vmem:[%s2 + $0x18] sm:$0xff]
      %329 = vset.pattern.permute.xlu0 0
      %330 = vperm.xlu0 %329, %v324
      %v331 = vpop.permute.xlu0 %330
      %334 = vset.pattern.permute.xlu0 0
      %335 = vperm.xlu0 %334, %v325
      %v336 = vpop.permute.xlu0 %335
      %339 = vset.pattern.permute.xlu0 0
      %340 = vperm.xlu0 %339, %v326
      %v341 = vpop.permute.xlu0 %340
      %344 = vset.pattern.permute.xlu0 0
      %345 = vperm.xlu0 %344, %v327
      %v346 = vpop.permute.xlu0 %345
      %v348 = vadd.f32 %v316, %v331
      %v349 = vadd.f32 %v317, %v331
      %v350 = vadd.f32 %v318, %v336
      %v351 = vadd.f32 %v319, %v336
      %v352 = vadd.f32 %v320, %v341
      %v353 = vadd.f32 %v321, %v341
      %v354 = vadd.f32 %v322, %v346
      %v355 = vadd.f32 %v323, %v346
      %356 = vst [vmem:[%s208] sm:$0xff] %v348
      %357 = vst [vmem:[%s208 + $0x8] sm:$0xff] %v349
      %358 = vst [vmem:[%s208 + $0x10] sm:$0xff] %v350
      %359 = vst [vmem:[%s208 + $0x18] sm:$0xff] %v351
      %360 = vst [vmem:[%s208 + $0x20] sm:$0xff] %v352
      %361 = vst [vmem:[%s208 + $0x28] sm:$0xff] %v353
      %362 = vst [vmem:[%s208 + $0x30] sm:$0xff] %v354
      %363 = vst [vmem:[%s208 + $0x38] sm:$0xff] %v355
      %s364 = smul.u32 2, %s19
      %p365 = scmp.lt.s32.totalorder %s18, 1
      %s366 = scalar_select %p365, %s18, 1
      %p367 = scmp.lt.s32.totalorder %s364, 1
      %s368 = scalar_select %p367, %s364, 1
      %s369 = smul.addr %s366, 8
      %s370 = sadd.s32 %s368, %s369
      %s371 = smul.addr %s370, 8
      %s372 = scalar_lea.vmem %s3, %s371
      // Predicated region
      $region33: #{layernorm_channels.1} parent=31 // pred_check
        %p373 = pneg %p116
      $region34: #{layernorm_channels.1} parent=31 // pred_check_branch
        %375 = sbr.rel (%p373) target = $region36
      $region35: #{layernorm_channels.1} parent=31 // pred_region
        %s376 = smul.u32 2, %s19
      $region36: #{layernorm_channels.1} parent=31 // pred_fallthru
        _
    $region32: #{layernorm_channels.1} parent=5 // pred_fallthru
      _
    %p377 = scmp.le.s32.totalorder 2, %s9
    // Predicated region
    $region37: #{layernorm_channels.1} parent=5 // pred_check
      %p378 = pneg %p377
    $region38: #{layernorm_channels.1} parent=5 // pred_check_branch
      %380 = sbr.rel (%p378) target = $region40
    $region39: #{layernorm_channels.1} parent=5 // pred_region
      %s381 = ssub.s32 %s9, 2
      // Predicated region
      $region41: #{layernorm_channels.1} parent=39 // pred_check
        %p382 = pneg %p122
      $region42: #{layernorm_channels.1} parent=39 // pred_check_branch
        %384 = sbr.rel (%p382) target = $region44
      $region43: #{layernorm_channels.1} parent=39 // pred_region
        %s385 = smul.u32 2, %s21
        %p386 = scmp.lt.s32.totalorder %s20, 1
        %s387 = scalar_select %p386, %s20, 1
        %p388 = scmp.lt.s32.totalorder %s385, 1
        %s389 = scalar_select %p388, %s385, 1
        %s390 = smul.addr %s387, 8
        %s391 = sadd.s32 %s389, %s390
        %s392 = smul.addr %s391, 8
        %s393 = scalar_lea.vmem %s3, %s392
      $region44: #{layernorm_channels.1} parent=39 // pred_fallthru
        _
    $region40: #{layernorm_channels.1} parent=5 // pred_fallthru
      _
  $region6: #{layernorm_channels.1} parent=0 // loop_footer
    %s13 = sadd.s32 1, %s9
  $region7: #{layernorm_channels.1} parent=0 // loop_footer_branch
    %8 = sbr.rel target = $region3
  $region8: #{layernorm_channels.1} parent=0 // loop_exit
    _

</llo_original>
